<compile_context>
chip_gen: v7x
topology: tpu7x:2x2x1
jax: 0.10.0
libtpu: 0.0.40
codegen_flags: <defaults>
</compile_context>

<pallas_src>
import functools

import jax
import jax.numpy as jnp
from jax import lax
from jax.experimental import pallas as pl
from jax.experimental.pallas import tpu as pltpu


def _round_up(x, m):
    return (x + m - 1) // m * m


def _pick_tile(total, unit, cap):
    """Largest multiple of `unit` that divides `total` and is <= cap.

    `total` must already be a multiple of `unit`.  Guarantees the tile divides
    the (padded) extent exactly, so no extra runtime padding is needed.
    """
    n_units = total // unit
    max_units = max(1, cap // unit)
    best = 1
    for d in range(1, min(n_units, max_units) + 1):
        if n_units % d == 0:
            best = d
    return best * unit


def _linear_kernel(x_ref, w_ref, b_ref, o_ref, acc_ref, *, weight_is_transposed):
    """One (tm, tn) output tile; K is the last ('arbitrary') grid axis."""
    k = pl.program_id(2)

    @pl.when(k == 0)
    def _():
        acc_ref[...] = jnp.zeros_like(acc_ref)

    if weight_is_transposed:
        # weight stored as (K, N): canonical (tm, tk) x (tk, tn) matmul.
        acc_ref[...] += jnp.dot(x_ref[...], w_ref[...],
                                preferred_element_type=jnp.float32)
    else:
        # PyTorch (out, in) layout: contract dim 1 of x with dim 1 of W
        # (an "NT" matmul the MXU handles directly; no host-side transpose).
        acc_ref[...] += lax.dot_general(
            x_ref[...], w_ref[...],
            dimension_numbers=(((1,), (1,)), ((), ())),
            preferred_element_type=jnp.float32)

    @pl.when(k == pl.num_programs(2) - 1)
    def _():
        # Bias added exactly once per output tile, in f32, at finalize.
        o_ref[...] = (acc_ref[...] + b_ref[...]).astype(o_ref.dtype)


def feature_fusion_forward(x, weight, bias, *, tm=None, tn=None, tk=None,
                           compute_dtype=None, weight_is_transposed=False,
                           interpret=False):
    """Equivalent of nn.Linear(in_features, out_features)(x).

    Args:
      x:      (B, in_features)
      weight: (out_features, in_features) PyTorch layout, or (in_features,
              out_features) if weight_is_transposed=True (pre-transposed once
              at parameter-init time).
      bias:   (out_features,)
      tm/tn/tk: optional tile overrides (must divide the padded extents;
              tn/tk multiples of 128 unless equal to the full dim).
      compute_dtype: e.g. jnp.bfloat16 -- recommended on ALL generations
              (v5e/v6e/v7x MXUs run bf16 natively; accumulation stays f32);
              the cast happens once in the wrapper so HBM bytes are halved.
      weight_is_transposed: weight is stored (K, N); uses the canonical dot.
      interpret: run under the Pallas interpreter (debug only).

    Returns:
      (B, out_features) in x.dtype.
    """
    B, K = x.shape
    if weight_is_transposed:
        K_w, N = weight.shape
    else:
        N, K_w = weight.shape
    assert K == K_w and bias.shape == (N,)

    out_dtype = x.dtype
    in_dtype = compute_dtype if compute_dtype is not None else x.dtype
    in_bytes = jnp.dtype(in_dtype).itemsize
    out_bytes = jnp.dtype(out_dtype).itemsize

    # Sublane packing unit for the M axis (bf16 packs 16 rows per vreg).
    m_unit = 16 if in_bytes == 2 else 8

    # ---- padded extents ---------------------------------------------------
    # K is the only axis that needs zero padding for correctness (it is the
    # reduction axis).  M is padded only to the sublane unit (a few zero rows
    # of x at most).  N is NEVER padded -- that would materialize a padded
    # copy of the whole weight in HBM on every call.
    Kp = _round_up(K, 128)
    Mp = _round_up(B, m_unit)
    Np = N

    # ---- tile sizes ---------------------------------------------------------
    cap_k = 4096 if in_bytes == 2 else 2048  # fewer K steps -> less acc RMW + step overhead
    if tk is None:
        tk = _pick_tile(Kp, 128, cap_k)
    if tn is None:
        # N multiple of 128 -> lane-dense divisor tile; otherwise one full-dim
        # (lane-masked) tile, which still avoids any weight padding.
        tn = _pick_tile(Np, 128, 512) if Np % 128 == 0 else Np
    if tm is None:
        tm = _pick_tile(Mp, m_unit, 512)

    # v7x has 2 TensorCores: make sure the 'parallel' grid extents multiply to
    # >= 2 when the problem is big enough to split, so both cores get work.
    if (Mp // tm) * (Np // tn) < 2:
        if Np % 128 == 0 and Np // 128 >= 2:
            tn = _pick_tile(Np, 128, max(128, (Np // 2) // 128 * 128))
        elif Mp // m_unit >= 2:
            tm = _pick_tile(Mp, m_unit, max(m_unit, (Mp // 2) // m_unit * m_unit))

    grid = (Mp // tm, Np // tn, Kp // tk)

    # ---- padding (K only, plus a handful of M rows) -------------------------
    if (Mp, Kp) != (B, K):
        x = jnp.pad(x, ((0, Mp - B), (0, Kp - K)))
    if Kp != K:
        if weight_is_transposed:
            weight = jnp.pad(weight, ((0, Kp - K), (0, 0)))
        else:
            weight = jnp.pad(weight, ((0, 0), (0, Kp - K)))

    # Cast ONCE in the wrapper (halves DMA bytes for bf16); MXU accumulates f32.
    if compute_dtype is not None:
        x = x.astype(compute_dtype)
        weight = weight.astype(compute_dtype)
    bias_row = bias.reshape(1, Np).astype(jnp.float32)

    # ---- derived VMEM budget (double-buffered inputs/outputs + accumulator) --
    vmem_bytes = (2 * (tm * tk + tn * tk) * in_bytes   # x + W tiles, 2-deep
                  + 2 * tm * tn * out_bytes            # output tile, 2-deep
                  + 2 * tn * 4                         # bias tile
                  + tm * tn * 4)                       # f32 accumulator
    # Add headroom; stay well under v7x's 64 MiB physical VMEM.
    vmem_limit = min(max(vmem_bytes + (4 << 20), 16 << 20), 48 << 20)

    cost = pl.CostEstimate(
        flops=2 * Mp * Np * Kp,
        transcendentals=0,
        bytes_accessed=(Mp * Kp + Np * Kp) * in_bytes + Mp * Np * out_bytes + Np * 4,
    )

    if weight_is_transposed:
        w_spec = pl.BlockSpec((tk, tn), lambda i, j, k: (k, j))
    else:
        w_spec = pl.BlockSpec((tn, tk), lambda i, j, k: (j, k))

    kernel = functools.partial(_linear_kernel,
                               weight_is_transposed=weight_is_transposed)

    out = pl.pallas_call(
        kernel,
        out_shape=jax.ShapeDtypeStruct((Mp, Np), out_dtype),
        grid_spec=pltpu.PrefetchScalarGridSpec(
            num_scalar_prefetch=0,
            grid=grid,
            in_specs=[
                pl.BlockSpec((tm, tk), lambda i, j, k: (i, k)),   # x tile
                w_spec,                                           # weight tile
                pl.BlockSpec((1, tn), lambda i, j, k: (0, j)),    # bias tile
            ],
            out_specs=pl.BlockSpec((tm, tn), lambda i, j, k: (i, j)),
            scratch_shapes=[pltpu.VMEM((tm, tn), jnp.float32)],
        ),
        compiler_params=pltpu.CompilerParams(
            dimension_semantics=("parallel", "parallel", "arbitrary"),
            vmem_limit_bytes=vmem_limit,
        ),
        cost_estimate=cost,
        interpret=interpret,
    )(x, weight, bias_row)

    if (Mp, Np) != (B, N):
        out = out[:B, :N]
    return out


if __name__ == "__main__":
    key = jax.random.PRNGKey(0)

    def make_case(k, B, in_features, out_features):
        kx, kw, kb = jax.random.split(k, 3)
        bound = 1.0 / (in_features ** 0.5)
        x = jax.random.normal(kx, (B, in_features), dtype=jnp.float32)
        w = jax.random.uniform(kw, (out_features, in_features),
                               minval=-bound, maxval=bound, dtype=jnp.float32)
        b = jax.random.uniform(kb, (out_features,),
                               minval=-bound, maxval=bound, dtype=jnp.float32)
        return x, w, b

    k1, k2 = jax.random.split(key)

    # Case 1: small shapes implied by the module (batch=8, in=32, out=64).
    x, w, b = make_case(k1, 8, 32, 64)
    ref = x @ w.T + b
    out = jax.block_until_ready(feature_fusion_forward(x, w, b))
    assert out.shape == (8, 64)
    assert jnp.allclose(out, ref, atol=1e-5, rtol=1e-5)

    # Same case with the pre-transposed (K, N) weight layout.
    out_t = jax.block_until_ready(
        feature_fusion_forward(x, w.T, b, weight_is_transposed=True))
    assert jnp.allclose(out_t, ref, atol=1e-5, rtol=1e-5)

    # Case 2: multiple N tiles (no weight padding), full-K tile, f32 path.
    x2, w2, b2 = make_case(k2, 200, 1024, 384)
    ref2 = x2 @ w2.T + b2
    out2 = jax.block_until_ready(feature_fusion_forward(x2, w2, b2))
    assert out2.shape == (200, 384)
    assert jnp.allclose(out2, ref2, atol=1e-4, rtol=1e-4)

    # Case 2 again on the bf16 (wrapper-cast) path: halved HBM stream,
    # f32 accumulation; looser tolerance for the bf16 mantissa.
    out2_bf16 = jax.block_until_ready(
        feature_fusion_forward(x2, w2, b2, compute_dtype=jnp.bfloat16))
    assert out2_bf16.shape == (200, 384)
    assert jnp.allclose(out2_bf16, ref2, atol=3e-2, rtol=3e-2)

    print("KERNEL_OK")
</pallas_src>

<mosaic_0001>
module attributes {stable_mosaic.version = 11 : i64} {
  func.func @_linear_kernel(%arg0: i32, %arg1: i32, %arg2: i32, %arg3: memref<8x128xf32, #tpu.memory_space<vmem>>, %arg4: memref<64x128xf32, #tpu.memory_space<vmem>>, %arg5: memref<1x64xf32, #tpu.memory_space<vmem>>, %arg6: memref<8x64xf32, #tpu.memory_space<vmem>>, %arg7: memref<8x64xf32, #tpu.memory_space<vmem>>) attributes {dimension_semantics = [#tpu.dimension_semantics<parallel>, #tpu.dimension_semantics<parallel>, #tpu.dimension_semantics<arbitrary>], iteration_bounds = array<i64: 1, 1, 1>, scalar_prefetch = 0 : i64, scratch_operands = 1 : i64, tpu.core_type = #tpu.core_type<tc>, window_params = [{transform_indices = @transform_0, window_bounds = array<i64: 8, 128>}, {transform_indices = @transform_1, window_bounds = array<i64: 64, 128>}, {transform_indices = @transform_2, window_bounds = array<i64: 1, 64>}, {transform_indices = @transform_3, window_bounds = array<i64: 8, 64>}]} {
    %c0_i32 = arith.constant 0 : i32
    %0 = arith.cmpi eq, %arg2, %c0_i32 : i32
    %1 = arith.extui %0 : i1 to i32
    %c0_i32_0 = arith.constant 0 : i32
    %2 = arith.cmpi ne, %1, %c0_i32_0 : i32
    scf.if %2 {
      %cst_10 = arith.constant 0.000000e+00 : f32
      %12 = vector.broadcast %cst_10 : f32 to vector<8x64xf32>
      %c0_11 = arith.constant 0 : index
      %c0_12 = arith.constant 0 : index
      %13 = vector.load %arg7[%c0_11, %c0_12] : memref<8x64xf32, #tpu.memory_space<vmem>>, vector<8x64xf32>
      tpu.vector_store %arg7[%c0_11, %c0_12], %12 {strides = array<i32>} : memref<8x64xf32, #tpu.memory_space<vmem>>, vector<8x64xf32>,
    } else {
    }
    %c0 = arith.constant 0 : index
    %c0_1 = arith.constant 0 : index
    %3 = vector.load %arg7[%c0, %c0_1] : memref<8x64xf32, #tpu.memory_space<vmem>>, vector<8x64xf32>
    %c0_2 = arith.constant 0 : index
    %c0_3 = arith.constant 0 : index
    %4 = vector.load %arg3[%c0_2, %c0_3] : memref<8x128xf32, #tpu.memory_space<vmem>>, vector<8x128xf32>
    %c0_4 = arith.constant 0 : index
    %c0_5 = arith.constant 0 : index
    %5 = vector.load %arg4[%c0_4, %c0_5] : memref<64x128xf32, #tpu.memory_space<vmem>>, vector<64x128xf32>
    %cst = arith.constant dense<0.000000e+00> : vector<8x64xf32>
    %6 = tpu.matmul %4, %5, %cst {dimension_numbers = #tpu.dot_dimension_numbers<[1], [1], [0], [0], [0, 0, 1, 0], [], []>} : vector<8x128xf32>, vector<64x128xf32>, vector<8x64xf32> -> vector<8x64xf32>
    %7 = arith.addf %3, %6 : vector<8x64xf32>
    %c0_6 = arith.constant 0 : index
    %c0_7 = arith.constant 0 : index
    %8 = vector.load %arg7[%c0_6, %c0_7] : memref<8x64xf32, #tpu.memory_space<vmem>>, vector<8x64xf32>
    tpu.vector_store %arg7[%c0_6, %c0_7], %7 {strides = array<i32>} : memref<8x64xf32, #tpu.memory_space<vmem>>, vector<8x64xf32>,
    %c0_i32_8 = arith.constant 0 : i32
    %9 = arith.cmpi eq, %arg2, %c0_i32_8 : i32
    %10 = arith.extui %9 : i1 to i32
    %c0_i32_9 = arith.constant 0 : i32
    %11 = arith.cmpi ne, %10, %c0_i32_9 : i32
    scf.if %11 {
      %c0_10 = arith.constant 0 : index
      %c0_11 = arith.constant 0 : index
      %12 = vector.load %arg7[%c0_10, %c0_11] : memref<8x64xf32, #tpu.memory_space<vmem>>, vector<8x64xf32>
      %c0_12 = arith.constant 0 : index
      %c0_13 = arith.constant 0 : index
      %13 = vector.load %arg5[%c0_12, %c0_13] : memref<1x64xf32, #tpu.memory_space<vmem>>, vector<1x64xf32>
      %14 = vector.broadcast %13 : vector<1x64xf32> to vector<8x64xf32>
      %15 = arith.addf %12, %14 : vector<8x64xf32>
      %c0_14 = arith.constant 0 : index
      %c0_15 = arith.constant 0 : index
      %16 = vector.load %arg6[%c0_14, %c0_15] : memref<8x64xf32, #tpu.memory_space<vmem>>, vector<8x64xf32>
      tpu.vector_store %arg6[%c0_14, %c0_15], %15 {strides = array<i32>} : memref<8x64xf32, #tpu.memory_space<vmem>>, vector<8x64xf32>,
    } else {
    }
    return
  }
  func.func @transform_0(%arg0: i32, %arg1: i32, %arg2: i32) -> (i32, i32) {
    %c0_i32 = arith.constant 0 : i32
    return %arg0, %arg2 : i32, i32
  }
  func.func @transform_1(%arg0: i32, %arg1: i32, %arg2: i32) -> (i32, i32) {
    %c0_i32 = arith.constant 0 : i32
    return %arg1, %arg2 : i32, i32
  }
  func.func @transform_2(%arg0: i32, %arg1: i32, %arg2: i32) -> (i32, i32) {
    %c0_i32 = arith.constant 0 : i32
    %c0_i32_0 = arith.constant 0 : i32
    return %c0_i32, %arg1 : i32, i32
  }
  func.func @transform_3(%arg0: i32, %arg1: i32, %arg2: i32) -> (i32, i32) {
    %c0_i32 = arith.constant 0 : i32
    return %arg0, %arg1 : i32, i32
  }
}

</mosaic_0001>

<llo_original>
// kernel: tpu_custom_call.1
$region0: #{tpu_custom_call.1}
  #allocation0 [shape = 'u32[]', space=smem, size = 0x4, offset = 0x4, fixed_abs, tag = 'smem constant byte address 0x4 - core index']
  #allocation1 [shape = 'u32[144,128]{1,0:T(1,128)}', space=vmem, size = 0x12000, scoped, tag = 'internal scratch']
  #allocation2 [shape = 'f32[8,64]{1,0:T(8,128)}', space=vmem, size = 0x1000, scoped, tag = 'scratch operand']
  %s0 = inlined_call_operand.hbm [shape: f32[8,128], index: 0, kind: input, shape index: {}]
  %s1 = inlined_call_operand.hbm [shape: f32[64,128], index: 1, kind: input, shape index: {}]
  %s2 = inlined_call_operand.vmem [shape: f32[1,64], index: 2, kind: input, shape index: {}]
  %s3 = inlined_call_operand.hbm [shape: f32[8,64], index: 3, kind: output, shape index: {}]
  %s4 = sld [smem:[#allocation0]]
  $region38: #{tpu_custom_call.1} parent=0
    _
  %s6 = ssub.s32 1, %s4
  %s7 = scalar_select 0, %s6, %s4
  $region1: #{tpu_custom_call.1} parent=0
    #allocation3 [shape = 'u8[4096]{0}', space=vmem, size = 0x1000, scoped, tag = 'input window, operand 0, single buffered']
    #allocation4 [shape = 's32[1]{0}', space=sflag, size = 0x4, scoped, tag = 'scoped memory for tpu_custom_call.1']
    #allocation5 [shape = 's32[1]{0}', space=sflag, size = 0x4, scoped, tag = 'scoped memory for tpu_custom_call.1']
    #allocation6 [shape = 'u8[32768]{0}', space=vmem, size = 0x8000, scoped, tag = 'input window, operand 1, single buffered']
    #allocation7 [shape = 's32[1]{0}', space=sflag, size = 0x4, scoped, tag = 'scoped memory for tpu_custom_call.1']
    #allocation8 [shape = 'u8[4096]{0}', space=vmem, size = 0x1000, scoped, tag = 'output window, operand 0, single buffered']
    %8 = vsyncpa [#allocation4], 0
    %9 = vsyncpa [#allocation7], 0
    %10 = vsyncpa [#allocation5], 0
    // Predicated region
    $region2: #{tpu_custom_call.1} parent=1 // pred_check
      _
    $region3: #{tpu_custom_call.1} parent=1 // pred_check_branch
      %12 = sbr.rel (0) target = $region5
    $region4: #{tpu_custom_call.1} parent=1 // pred_region
      %s14 = ssub.s32 128, 128
      %15 = vsyncadd [#allocation4], %s14
      %s17 = sshll.u32 [#allocation3], 4
      %s18 = int_to_ptr.vmem [resolvable:$true] %s17
      %20 = dma.hbm_to_vmem [thread:$0]  %s0, 128, %s18, [#allocation4]
    $region5: #{tpu_custom_call.1} parent=1 // pred_fallthru
      _
    // Predicated region
    $region6: #{tpu_custom_call.1} parent=1 // pred_check
      _
    $region7: #{tpu_custom_call.1} parent=1 // pred_check_branch
      %22 = sbr.rel (0) target = $region9
    $region8: #{tpu_custom_call.1} parent=1 // pred_region
      %s24 = ssub.s32 1024, 1024
      %25 = vsyncadd [#allocation7], %s24
      %s26 = sshll.u32 [#allocation6], 4
      %s27 = int_to_ptr.vmem [resolvable:$true] %s26
      %32 = dma.hbm_to_vmem [thread:$0]  %s1, 1024, %s27, [#allocation7], 128, 128, 8
    $region9: #{tpu_custom_call.1} parent=1 // pred_fallthru
      _
    // Predicated region
    $region10: #{tpu_custom_call.1} parent=1 // pred_check
      _
    $region11: #{tpu_custom_call.1} parent=1 // pred_check_branch
      %34 = sbr.rel (0) target = $region13
    $region12: #{tpu_custom_call.1} parent=1 // pred_region
      _
    $region13: #{tpu_custom_call.1} parent=1 // pred_fallthru
      _
    // Predicated region
    $region14: #{tpu_custom_call.1} parent=1 // pred_check
      _
    $region15: #{tpu_custom_call.1} parent=1 // pred_check_branch
      %36 = sbr.rel (0) target = $region17
    $region16: #{tpu_custom_call.1} parent=1 // pred_region
      %37 = dma.done [#allocation4], 128
    $region17: #{tpu_custom_call.1} parent=1 // pred_fallthru
      _
    // Predicated region
    $region18: #{tpu_custom_call.1} parent=1 // pred_check
      _
    $region19: #{tpu_custom_call.1} parent=1 // pred_check_branch
      %39 = sbr.rel (0) target = $region21
    $region20: #{tpu_custom_call.1} parent=1 // pred_region
      %40 = dma.done [#allocation7], 1024
    $region21: #{tpu_custom_call.1} parent=1 // pred_fallthru
      _
    %p41 = scmp.eq.s32.totalorder 0, 0
    // Predicated region
    $region22: #{tpu_custom_call.1} parent=1 // pred_check
      %p42 = pneg %p41
    $region23: #{tpu_custom_call.1} parent=1 // pred_check_branch
      %44 = sbr.rel (%p42) target = $region25
    $region24: #{tpu_custom_call.1} parent=1 // pred_region
      %vm45 = vcmask 523264
      %46 = vst.msk [vmem:[#allocation2] sm:$0xff] %vm45, 0.0
    $region25: #{tpu_custom_call.1} parent=1 // pred_fallthru
      _
    %v47 = vld [vmem:[#allocation2] sm:$0xff]
    %v48 = vld [vmem:[#allocation3] sm:$0xff]
    %v49 = vld [vmem:[#allocation6] sm:$0xff]
    %v50 = vld [vmem:[#allocation6 + $0x8] sm:$0xff]
    %v51 = vld [vmem:[#allocation6 + $0x10] sm:$0xff]
    %v52 = vld [vmem:[#allocation6 + $0x18] sm:$0xff]
    %v53 = vld [vmem:[#allocation6 + $0x20] sm:$0xff]
    %v54 = vld [vmem:[#allocation6 + $0x28] sm:$0xff]
    %v55 = vld [vmem:[#allocation6 + $0x30] sm:$0xff]
    %v56 = vld [vmem:[#allocation6 + $0x38] sm:$0xff]
    %57 = vmatprep.subr.mxu0 0.0
    %58 = vmatpush1.xpose.msra.mxu0 %v49
    %59 = vmatprep.subr.mxu0 0.0
    %60 = vmatpush1.xpose.msra.mxu0 %v50
    %61 = vmatprep.subr.mxu0 0.0
    %62 = vmatpush1.xpose.msra.mxu0 %v51
    %63 = vmatprep.subr.mxu0 0.0
    %64 = vmatpush1.xpose.msra.mxu0 %v52
    %65 = vmatprep.subr.mxu0 0.0
    %66 = vmatpush1.xpose.msra.mxu0 %v53
    %67 = vmatprep.subr.mxu0 0.0
    %68 = vmatpush1.xpose.msra.mxu0 %v54
    %69 = vmatprep.subr.mxu0 0.0
    %70 = vmatpush1.xpose.msra.mxu0 %v55
    %71 = vmatprep.subr.mxu0 0.0
    %72 = vmatpush1.xpose.msra.mxu0 %v56
    %73 = vmatprep.subr.mxu0 0.0
    %74 = vmatpush1.xpose.msra.mxu0 0.0
    %75 = vmatprep.subr.mxu0 0.0
    %76 = vmatpush1.xpose.msra.mxu0 0.0
    %77 = vmatprep.subr.mxu0 0.0
    %78 = vmatpush1.xpose.msra.mxu0 0.0
    %79 = vmatprep.subr.mxu0 0.0
    %80 = vmatpush1.xpose.msra.mxu0 0.0
    %81 = vmatprep.subr.mxu0 0.0
    %82 = vmatpush1.xpose.msra.mxu0 0.0
    %83 = vmatprep.subr.mxu0 0.0
    %84 = vmatpush1.xpose.msra.mxu0 0.0
    %85 = vmatprep.subr.mxu0 0.0
    %86 = vmatpush1.xpose.msra.mxu0 0.0
    %87 = vmatprep.subr.mxu0 0.0
    %88 = vmatpush1.xpose.msra.mxu0 0.0
    %89 = vmatprep.subr.mxu0 0.0
    %90 = vmatpush1.xpose.msra.mxu0 0.0
    %91 = vmatprep.subr.mxu0 0.0
    %92 = vmatpush1.xpose.msra.mxu0 0.0
    %93 = vmatprep.subr.mxu0 0.0
    %94 = vmatpush1.xpose.msra.mxu0 0.0
    %95 = vmatprep.subr.mxu0 0.0
    %96 = vmatpush1.xpose.msra.mxu0 0.0
    %97 = vmatprep.subr.mxu0 0.0
    %98 = vmatpush1.xpose.msra.mxu0 0.0
    %99 = vmatprep.subr.mxu0 0.0
    %100 = vmatpush1.xpose.msra.mxu0 0.0
    %101 = vmatprep.subr.mxu0 0.0
    %102 = vmatpush1.xpose.msra.mxu0 0.0
    %103 = vmatprep.subr.mxu0 0.0
    %104 = vmatpush1.xpose.msra.mxu0 0.0
    %105 = vmatprep.subr.mxu0 0.0
    %106 = vmatpush1.xpose.msra.mxu0 0.0
    %107 = vmatprep.subr.mxu0 0.0
    %108 = vmatpush1.xpose.msra.mxu0 0.0
    %109 = vmatprep.subr.mxu0 0.0
    %110 = vmatpush1.xpose.msra.mxu0 0.0
    %111 = vmatprep.subr.mxu0 0.0
    %112 = vmatpush1.xpose.msra.mxu0 0.0
    %113 = vmatprep.subr.mxu0 0.0
    %114 = vmatpush1.xpose.msra.mxu0 0.0
    %115 = vmatprep.subr.mxu0 0.0
    %116 = vmatpush1.xpose.msra.mxu0 0.0
    %117 = vmatprep.subr.mxu0 0.0
    %118 = vmatpush1.xpose.msra.mxu0 0.0
    %119 = vmatprep.subr.mxu0 0.0
    %120 = vmatpush1.xpose.msra.mxu0 0.0
    %121 = vmatprep.mubr.f32.mxu0 0.0
    %122 = vmatmul.mubr.f32.gmra.mrb[0].mxu0 %v48
    %v123 = vpop.f32.mrb[0].mxu0
    %v124 = vadd.f32 0.0, %v123
    %v125 = vpop.f32.mrb[0].mxu0
    %126 = vdwg.mxu0
    %v127 = vadd.f32 %v47, %v124
    %vm128 = vcmask 523264
    %129 = vst.msk [vmem:[#allocation2] sm:$0xff] %vm128, %v127
    // Predicated region
    $region26: #{tpu_custom_call.1} parent=1 // pred_check
      %p130 = pneg %p41
    $region27: #{tpu_custom_call.1} parent=1 // pred_check_branch
      %132 = sbr.rel (%p130) target = $region29
    $region28: #{tpu_custom_call.1} parent=1 // pred_region
      %v133 = vld [vmem:[#allocation2] sm:$0xff]
      %v134 = vld [vmem:[%s2] sm:$0x1]
      %v136 = vlaneseq
      %v137 = vshrl.u32 %v136, 7
      %v138 = vsub.s32 0, %v137
      %v139 = vrot.slane %v134, %v138
      %v141 = vadd.f32 %v133, %v139
      %142 = vst.msk [vmem:[#allocation8] sm:$0xff] %vm128, %v141
    $region29: #{tpu_custom_call.1} parent=1 // pred_fallthru
      _
    // Predicated region
    $region30: #{tpu_custom_call.1} parent=1 // pred_check
      _
    $region31: #{tpu_custom_call.1} parent=1 // pred_check_branch
      %144 = sbr.rel (0) target = $region33
    $region32: #{tpu_custom_call.1} parent=1 // pred_region
      %s146 = ssub.s32 128, 128
      %147 = vsyncadd [#allocation5], %s146
      %s149 = sshll.u32 [#allocation8], 4
      %s150 = int_to_ptr.vmem [resolvable:$true] %s149
      %152 = dma.vmem_to_hbm [thread:$0]  %s150, 128, %s3, [#allocation5]
    $region33: #{tpu_custom_call.1} parent=1 // pred_fallthru
      _
    // Predicated region
    $region34: #{tpu_custom_call.1} parent=1 // pred_check
      _
    $region35: #{tpu_custom_call.1} parent=1 // pred_check_branch
      %154 = sbr.rel (0) target = $region37
    $region36: #{tpu_custom_call.1} parent=1 // pred_region
      %155 = dma.done [#allocation5], 128
    $region37: #{tpu_custom_call.1} parent=1 // pred_fallthru
      _
    %156 = vsyncpa [#allocation4], 1
    %157 = vsyncpa [#allocation7], 1
    %158 = vsyncpa [#allocation5], 1

</llo_original>
